<compile_context>
chip_gen: v6e
topology: v6e:2x2x1
jax: 0.10.0
libtpu: 0.0.40
codegen_flags: <defaults>
</compile_context>

<pallas_src>
import functools

import jax
import jax.numpy as jnp
import numpy as np
from jax.experimental import pallas as pl
from jax.experimental.pallas import tpu as pltpu


def _dot(a, b):
    """Natural-layout MXU matmul (contract LHS axis 1 with RHS axis 0), f32 acc."""
    return jax.lax.dot_general(
        a, b, (((1,), (0,)), ((), ())), preferred_element_type=jnp.float32
    )


def _round_up(x, m):
    return ((x + m - 1) // m) * m


def _vq_kernel(z_ref, wf_ref, bf_ref, icbwe_ref, zq_ref, psum_ref, *, m_total):
    i = pl.program_id(0)
    tm = z_ref.shape[0]
    n_e = icbwe_ref.shape[0]

    z = z_ref[...]                                       # (TM, C_in) f32

    # --- fused compress + distance-score matmul (single N-pass on 256-wide MXU) ---
    #   y[:, :n_e] = ||icb||^2 - 2 * zc @ icb^T   (argmin score; ||zc||^2 omitted,
    #                                              it is constant per row)
    #   y[:, n_e:] = zc = z @ Wc^T + bc
    y = _dot(z, wf_ref[...]) + bf_ref[...]               # (TM, n_e + D)
    s = y[:, :n_e]                                       # (TM, n_e)  vreg-aligned
    zc = y[:, n_e:]                                      # (TM, D)    vreg-aligned

    # --- indices = argmin(score) (first-min tie break via iota-min, XLU) ---------
    col_ids = jax.lax.broadcasted_iota(jnp.int32, (tm, n_e), 1)
    min_s = jnp.min(s, axis=1, keepdims=True)            # (TM, 1)
    idx = jnp.min(jnp.where(s == min_s, col_ids, n_e),
                  axis=1, keepdims=True)                 # (TM, 1)

    # --- output = expand(z_q) folded into the one-hot matmul ----------------------
    # one-hot is exact in bf16; icb_we = icb @ We^T + be precomputed in wrapper.
    oh = (col_ids == idx).astype(jnp.bfloat16)           # (TM, n_e)
    zq_ref[...] = _dot(oh, icbwe_ref[...]).astype(zq_ref.dtype)   # (TM, C_in)

    # --- loss partial via ||z_q - zc||^2 == ||zc||^2 + min_s (clamp >= 0) ---------
    zc_sq = jnp.sum(zc * zc, axis=1, keepdims=True)      # (TM, 1) 16-lane XLU reduce
    min_d = jnp.maximum(zc_sq + min_s, 0.0)              # guard fp cancellation
    row_ids = jax.lax.broadcasted_iota(jnp.int32, (tm, 1), 0)
    valid = (i * tm + row_ids) < m_total                 # mask grid-padding rows
    partial = jnp.sum(jnp.where(valid, min_d, 0.0),
                      axis=0, keepdims=True)             # (1, 1)
    # lane-dense (8,128) store of the per-tile partial; wrapper reads [i,0,0]
    psum_ref[0] = jnp.broadcast_to(partial, (8, 128))


def vq_forward(z, emb, wt, bt, wc, bc, we, be, *, tm_max=2048):
    """z: (B, N, C_in) channels-last; weights in torch layout:
       wt:(D,D), bt:(D,), wc:(D,C_in), bc:(D,), we:(C_in,D), be:(C_in,)."""
    B, N, C_in = z.shape
    n_e, D = emb.shape
    M = B * N
    z_flat = z.reshape(M, C_in).astype(jnp.float32)

    # ---- grid-invariant preprocessing hoisted to the wrapper (tiny shapes) -------
    hi = jax.lax.Precision.HIGHEST
    f32 = jnp.float32
    emb32, wt32, bt32 = emb.astype(f32), wt.astype(f32), bt.astype(f32)
    wc32, bc32 = wc.astype(f32), bc.astype(f32)
    we32, be32 = we.astype(f32), be.astype(f32)

    icb = jnp.dot(emb32, wt32.T, precision=hi) + bt32[None, :]        # (n_e, D)
    icb_sq = jnp.sum(icb * icb, axis=1)[None, :]                      # (1, n_e)
    cross_w = jnp.dot(wc32.T, icb.T, precision=hi)                    # (C_in, n_e)
    # Fused RHS: [ -2*Wc^T@icb^T | Wc^T ]  -> (C_in, n_e + D); score lanes first so
    # both in-kernel slices land on 128-lane boundaries.
    w_fused = jnp.concatenate([-2.0 * cross_w, wc32.T], axis=1)       # (C_in, n_e+D)
    b_fused = jnp.concatenate(
        [icb_sq - 2.0 * jnp.dot(bc32[None, :], icb.T, precision=hi),
         bc32[None, :]], axis=1)                                      # (1, n_e+D)
    # expand() folded into the one-hot matmul (one-hot rows sum to 1 -> bias folds).
    icb_we = (jnp.dot(icb, we32.T, precision=hi)
              + be32[None, :]).astype(jnp.bfloat16)                   # (n_e, C_in)

    # ---- tiling over tokens -------------------------------------------------------
    tm = min(tm_max, _round_up(M, 8))
    if M >= 16 and pl.cdiv(M, tm) < 2:
        # >= 2 tiles so both v7x TensorCores get work (cheap on 1-TC chips too).
        tm = _round_up(pl.cdiv(M, 2), 8)
    num_tiles = pl.cdiv(M, tm)

    kernel = functools.partial(_vq_kernel, m_total=M)

    nd = n_e + D
    flops = 2 * M * (C_in * nd + n_e * C_in)
    bytes_accessed = (4 * 2 * M * C_in + 4 * (C_in * nd + nd)
                      + 2 * n_e * C_in + 4 * num_tiles * 8 * 128)

    zq_flat, psums = pl.pallas_call(
        kernel,
        grid=(num_tiles,),
        in_specs=[
            pl.BlockSpec((tm, C_in), lambda i: (i, 0)),       # z         (tiled)
            pl.BlockSpec((C_in, nd), lambda i: (0, 0)),       # W_fused   (resident)
            pl.BlockSpec((1, nd), lambda i: (0, 0)),          # bias row
            pl.BlockSpec((n_e, C_in), lambda i: (0, 0)),      # icb@We^T+be (bf16)
        ],
        out_specs=(
            pl.BlockSpec((tm, C_in), lambda i: (i, 0)),       # zq        (tiled)
            pl.BlockSpec((1, 8, 128), lambda i: (i, 0, 0)),   # loss partials
        ),
        out_shape=(
            jax.ShapeDtypeStruct((M, C_in), jnp.float32),
            jax.ShapeDtypeStruct((num_tiles, 8, 128), jnp.float32),
        ),
        compiler_params=pltpu.CompilerParams(
            dimension_semantics=("parallel",),                # no cross-tile state
            vmem_limit_bytes=32 * 1024 * 1024,
        ),
        cost_estimate=pl.CostEstimate(
            flops=flops, transcendentals=0, bytes_accessed=bytes_accessed),
    )(z_flat, w_fused, b_fused, icb_we)

    # Tiny jnp epilogue merges per-tile (and per-core on v7x) partial sums.
    loss = 3.0 * jnp.sum(psums[:, 0, 0]) / float(M * D)
    return zq_flat.reshape(B, N, C_in), loss


def vq_reference(z, emb, wt, bt, wc, bc, we, be):
    """Pure-JAX reference of the training-mode forward."""
    B, N, C_in = z.shape
    n_e, D = emb.shape
    hi = jax.lax.Precision.HIGHEST
    icb = jnp.dot(emb, wt.T, precision=hi) + bt
    zf = z.reshape(-1, C_in)
    zc = jnp.dot(zf, wc.T, precision=hi) + bc
    d = (jnp.sum(zc ** 2, axis=1, keepdims=True)
         + jnp.sum(icb ** 2, axis=1)[None, :]
         - 2.0 * jnp.dot(zc, icb.T, precision=hi))
    idx = jnp.argmin(d, axis=1)
    z_q = icb[idx]
    loss = 3.0 * jnp.mean((z_q - zc) ** 2)
    zq_out = (jnp.dot(z_q, we.T, precision=hi) + be).reshape(B, N, C_in)
    return zq_out, loss


def init_params(key, n_e, channels_in, channels_dim):
    k1, k2, k3, k4, k5, k6, k7 = jax.random.split(key, 7)
    # embedding: trunc_normal(mean=0, std=1, a=-3, b=3)
    emb = jax.random.truncated_normal(
        k1, -3.0, 3.0, (n_e, channels_dim), jnp.float32)
    # nn.Linear default init: U(-1/sqrt(fan_in), 1/sqrt(fan_in))
    lim_t = 1.0 / np.sqrt(channels_dim)
    wt = jax.random.uniform(k2, (channels_dim, channels_dim), jnp.float32,
                            -lim_t, lim_t)
    bt = jax.random.uniform(k3, (channels_dim,), jnp.float32, -lim_t, lim_t)
    lim_c = 1.0 / np.sqrt(channels_in)
    wc = jax.random.uniform(k4, (channels_dim, channels_in), jnp.float32,
                            -lim_c, lim_c)
    bc = jax.random.uniform(k5, (channels_dim,), jnp.float32, -lim_c, lim_c)
    lim_e = 1.0 / np.sqrt(channels_dim)
    we = jax.random.uniform(k6, (channels_in, channels_dim), jnp.float32,
                            -lim_e, lim_e)
    be = jax.random.uniform(k7, (channels_in,), jnp.float32, -lim_e, lim_e)
    return emb, wt, bt, wc, bc, we, be


if __name__ == "__main__":
    n_e, channels_in, channels_dim = 128, 32, 16
    B, N = 2, 64

    key = jax.random.PRNGKey(0)
    kp, kz = jax.random.split(key)
    params = init_params(kp, n_e, channels_in, channels_dim)
    z = jax.random.normal(kz, (B, N, channels_in), jnp.float32)

    # M=128 -> the >=2-tiles rule gives two 64-row tiles, exercising the multi-tile
    # grid and the partial-sum merge at demo shapes; production default tm_max=2048.
    zq, loss = vq_forward(z, *params)
    jax.block_until_ready((zq, loss))

    zq_ref, loss_ref = vq_reference(z, *params)
    np.testing.assert_allclose(np.asarray(zq), np.asarray(zq_ref),
                               rtol=1e-2, atol=1e-2)
    np.testing.assert_allclose(float(loss), float(loss_ref),
                               rtol=1e-2, atol=1e-2)

    # TODO(synk): eval-mode / is_pre_cal branches, the unique-index count and the
    # stochastic random.random() logging print are not represented in the kernel.
    print("KERNEL_OK")
</pallas_src>

<mosaic_0001>
module attributes {stable_mosaic.version = 11 : i64} {
  func.func @_vq_kernel(%arg0: i32, %arg1: memref<64x32xf32, #tpu.memory_space<vmem>>, %arg2: memref<32x144xf32, #tpu.memory_space<vmem>>, %arg3: memref<1x144xf32, #tpu.memory_space<vmem>>, %arg4: memref<128x32xbf16, #tpu.memory_space<vmem>>, %arg5: memref<64x32xf32, #tpu.memory_space<vmem>>, %arg6: memref<1x8x128xf32, #tpu.memory_space<vmem>>) attributes {dimension_semantics = [#tpu.dimension_semantics<parallel>], iteration_bounds = array<i64: 2>, scalar_prefetch = 0 : i64, scratch_operands = 0 : i64, tpu.core_type = #tpu.core_type<tc>, window_params = [{transform_indices = @transform_0, window_bounds = array<i64: 64, 32>}, {pipeline_mode = #tpu.pipeline_mode<synchronous>, transform_indices = @transform_1, window_bounds = array<i64: 32, 144>}, {pipeline_mode = #tpu.pipeline_mode<synchronous>, transform_indices = @transform_2, window_bounds = array<i64: 1, 144>}, {pipeline_mode = #tpu.pipeline_mode<synchronous>, transform_indices = @transform_3, window_bounds = array<i64: 128, 32>}, {transform_indices = @transform_4, window_bounds = array<i64: 64, 32>}, {transform_indices = @transform_5, window_bounds = array<i64: 1, 8, 128>}]} {
    %c0 = arith.constant 0 : index
    %c0_0 = arith.constant 0 : index
    %0 = vector.load %arg1[%c0, %c0_0] : memref<64x32xf32, #tpu.memory_space<vmem>>, vector<64x32xf32>
    %c0_1 = arith.constant 0 : index
    %c0_2 = arith.constant 0 : index
    %1 = vector.load %arg2[%c0_1, %c0_2] : memref<32x144xf32, #tpu.memory_space<vmem>>, vector<32x144xf32>
    %cst = arith.constant dense<0.000000e+00> : vector<64x144xf32>
    %2 = tpu.matmul %0, %1, %cst {dimension_numbers = #tpu.dot_dimension_numbers<[1], [0], [0], [1], [0, 0, 1, 1], [], []>} : vector<64x32xf32>, vector<32x144xf32>, vector<64x144xf32> -> vector<64x144xf32>
    %c0_3 = arith.constant 0 : index
    %c0_4 = arith.constant 0 : index
    %3 = vector.load %arg3[%c0_3, %c0_4] : memref<1x144xf32, #tpu.memory_space<vmem>>, vector<1x144xf32>
    %4 = vector.broadcast %3 : vector<1x144xf32> to vector<64x144xf32>
    %5 = arith.addf %2, %4 : vector<64x144xf32>
    %6 = vector.extract_strided_slice %5 {offsets = [0, 0], sizes = [64, 128], strides = [1, 1]} : vector<64x144xf32> to vector<64x128xf32>
    %7 = vector.extract_strided_slice %5 {offsets = [0, 128], sizes = [64, 16], strides = [1, 1]} : vector<64x144xf32> to vector<64x16xf32>
    %8 = tpu.iota {dimensions = array<i32: 1>} : vector<64x128xi32>
    %cst_5 = arith.constant dense<0x7F800000> : vector<64xf32>
    %9 = vector.multi_reduction <minimumf>, %6, %cst_5 [1] : vector<64x128xf32> to vector<64xf32>
    %10 = vector.shape_cast %9 : vector<64xf32> to vector<64x1xf32>
    %11 = vector.broadcast %10 : vector<64x1xf32> to vector<64x128xf32>
    %12 = arith.cmpf oeq, %6, %11 : vector<64x128xf32>
    %c128_i32 = arith.constant 128 : i32
    %13 = vector.broadcast %c128_i32 : i32 to vector<64x128xi32>
    %14 = arith.select %12, %8, %13 : vector<64x128xi1>, vector<64x128xi32>
    %cst_6 = arith.constant dense<2147483647> : vector<64xi32>
    %15 = vector.multi_reduction <minsi>, %14, %cst_6 [1] : vector<64x128xi32> to vector<64xi32>
    %16 = vector.shape_cast %15 : vector<64xi32> to vector<64x1xi32>
    %17 = vector.broadcast %16 : vector<64x1xi32> to vector<64x128xi32>
    %18 = arith.cmpi eq, %8, %17 : vector<64x128xi32>
    %19 = arith.extui %18 : vector<64x128xi1> to vector<64x128xi32>
    %20 = arith.sitofp %19 : vector<64x128xi32> to vector<64x128xf32>
    %21 = arith.truncf %20 : vector<64x128xf32> to vector<64x128xbf16>
    %c0_7 = arith.constant 0 : index
    %c0_8 = arith.constant 0 : index
    %22 = vector.load %arg4[%c0_7, %c0_8] : memref<128x32xbf16, #tpu.memory_space<vmem>>, vector<128x32xbf16>
    %cst_9 = arith.constant dense<0.000000e+00> : vector<64x32xf32>
    %23 = tpu.matmul %21, %22, %cst_9 {dimension_numbers = #tpu.dot_dimension_numbers<[1], [0], [0], [1], [0, 0, 1, 1], [], []>} : vector<64x128xbf16>, vector<128x32xbf16>, vector<64x32xf32> -> vector<64x32xf32>
    %c0_10 = arith.constant 0 : index
    %c0_11 = arith.constant 0 : index
    %24 = vector.load %arg5[%c0_10, %c0_11] : memref<64x32xf32, #tpu.memory_space<vmem>>, vector<64x32xf32>
    tpu.vector_store %arg5[%c0_10, %c0_11], %23 {strides = array<i32>} : memref<64x32xf32, #tpu.memory_space<vmem>>, vector<64x32xf32>,
    %25 = arith.mulf %7, %7 : vector<64x16xf32>
    %cst_12 = arith.constant dense<0.000000e+00> : vector<64xf32>
    %26 = vector.multi_reduction <add>, %25, %cst_12 [1] : vector<64x16xf32> to vector<64xf32>
    %27 = vector.shape_cast %26 : vector<64xf32> to vector<64x1xf32>
    %28 = arith.addf %27, %10 : vector<64x1xf32>
    %cst_13 = arith.constant 0.000000e+00 : f32
    %29 = vector.broadcast %cst_13 : f32 to vector<64x1xf32>
    %30 = arith.maximumf %28, %29 : vector<64x1xf32>
    %31 = tpu.iota {dimensions = array<i32: 0>} : vector<64x1xi32>
    %c64_i32 = arith.constant 64 : i32
    %32 = arith.muli %arg0, %c64_i32 : i32
    %33 = vector.broadcast %32 : i32 to vector<64x1xi32>
    %34 = arith.addi %33, %31 : vector<64x1xi32>
    %c128_i32_14 = arith.constant 128 : i32
    %35 = vector.broadcast %c128_i32_14 : i32 to vector<64x1xi32>
    %36 = arith.cmpi slt, %34, %35 : vector<64x1xi32>
    %cst_15 = arith.constant 0.000000e+00 : f32
    %37 = vector.broadcast %cst_15 : f32 to vector<64x1xf32>
    %38 = arith.select %36, %30, %37 : vector<64x1xi1>, vector<64x1xf32>
    %cst_16 = arith.constant dense<0.000000e+00> : vector<1xf32>
    %39 = vector.multi_reduction <add>, %38, %cst_16 [0] : vector<64x1xf32> to vector<1xf32>
    %40 = vector.shape_cast %39 : vector<1xf32> to vector<1x1xf32>
    %41 = vector.shape_cast %40 : vector<1x1xf32> to vector<1x1xf32>
    %42 = vector.broadcast %41 : vector<1x1xf32> to vector<8x128xf32>
    %c0_17 = arith.constant 0 : index
    %c0_18 = arith.constant 0 : index
    %c0_19 = arith.constant 0 : index
    %43 = vector.load %arg6[%c0_17, %c0_18, %c0_19] : memref<1x8x128xf32, #tpu.memory_space<vmem>>, vector<1x8x128xf32>
    %44 = vector.shape_cast %43 : vector<1x8x128xf32> to vector<8x128xf32>
    %45 = vector.shape_cast %42 : vector<8x128xf32> to vector<1x8x128xf32>
    tpu.vector_store %arg6[%c0_17, %c0_18, %c0_19], %45 {strides = array<i32>} : memref<1x8x128xf32, #tpu.memory_space<vmem>>, vector<1x8x128xf32>,
    return
  }
  func.func @transform_0(%arg0: i32) -> (i32, i32) {
    %c0_i32 = arith.constant 0 : i32
    %c0_i32_0 = arith.constant 0 : i32
    return %arg0, %c0_i32 : i32, i32
  }
  func.func @transform_1(%arg0: i32) -> (i32, i32) {
    %c0_i32 = arith.constant 0 : i32
    %c0_i32_0 = arith.constant 0 : i32
    %c0_i32_1 = arith.constant 0 : i32
    return %c0_i32, %c0_i32_0 : i32, i32
  }
  func.func @transform_2(%arg0: i32) -> (i32, i32) {
    %c0_i32 = arith.constant 0 : i32
    %c0_i32_0 = arith.constant 0 : i32
    %c0_i32_1 = arith.constant 0 : i32
    return %c0_i32, %c0_i32_0 : i32, i32
  }
  func.func @transform_3(%arg0: i32) -> (i32, i32) {
    %c0_i32 = arith.constant 0 : i32
    %c0_i32_0 = arith.constant 0 : i32
    %c0_i32_1 = arith.constant 0 : i32
    return %c0_i32, %c0_i32_0 : i32, i32
  }
  func.func @transform_4(%arg0: i32) -> (i32, i32) {
    %c0_i32 = arith.constant 0 : i32
    %c0_i32_0 = arith.constant 0 : i32
    return %arg0, %c0_i32 : i32, i32
  }
  func.func @transform_5(%arg0: i32) -> (i32, i32, i32) {
    %c0_i32 = arith.constant 0 : i32
    %c0_i32_0 = arith.constant 0 : i32
    %c0_i32_1 = arith.constant 0 : i32
    return %arg0, %c0_i32, %c0_i32_0 : i32, i32, i32
  }
}

</mosaic_0001>

<llo_original>
// kernel: tpu_custom_call.1
$region0: #{tpu_custom_call.1}
  #allocation0 [shape = 'u32[]', space=smem, size = 0x4, offset = 0x4, fixed_abs, tag = 'smem constant byte address 0x4 - core index']
  #allocation1 [shape = 'u32[144,128]{1,0:T(1,128)}', space=vmem, size = 0x12000, scoped, tag = 'internal scratch']
  %s0 = inlined_call_operand.vmem [shape: f32[128,32], index: 0, kind: input, shape index: {}]
  %s1 = inlined_call_operand.vmem [shape: f32[32,144], index: 1, kind: input, shape index: {}]
  %s2 = inlined_call_operand.vmem [shape: f32[1,144], index: 2, kind: input, shape index: {}]
  %s3 = inlined_call_operand.vmem [shape: bf16[128,32], index: 3, kind: input, shape index: {}]
  %s4 = inlined_call_operand.vmem [shape: f32[128,32], index: 4, kind: output, shape index: {0}]
  %s5 = inlined_call_operand.hbm [shape: f32[2,8,128], index: 5, kind: output, shape index: {1}]
  %6 = xla_tuple %s4, %s5
  %s7 = sld [smem:[#allocation0]]
  $region57: #{tpu_custom_call.1} parent=0
    _
  %s9 = ssub.s32 1, %s7
  %s10 = scalar_select 0, %s9, %s7
  $region1: #{tpu_custom_call.1} parent=0
    #allocation2 [shape = 'u8[8192]{0}', space=vmem, size = 0x2000, scoped, tag = 'output window, operand 1']
    #allocation3 [shape = 's32[2]{0}', space=sflag, size = 0x8, scoped, tag = 'scoped memory for tpu_custom_call.1']
    %11 = vsyncpa [#allocation3], 0
    %s12 = scalar_lea.sflag [#allocation3], 1
    %13 = vsyncpa %s12, 0
    loop: start=0, step=1, limit=4
    $region2: #{tpu_custom_call.1} parent=1 // loop_pre_header
      _
    $region3: #{tpu_custom_call.1} parent=1 // loop_header
      %s15 = sphi 0, %s19
      %p16 = scmp.ge.s32.totalorder %s15, 4
      %s25 = sphi 0, %s27
      %s28 = sphi 0, %s25
      %s29 = sphi 0, %s28
      %s45 = sphi 0, %s29
      %s49 = sphi 0, %s49
      %s51 = sphi 0, %s49
      %s52 = sphi 0, %s51
      %s66 = sphi 0, %s52
      %s70 = sphi 0, %s70
      %s72 = sphi 0, %s70
      %s73 = sphi 0, %s72
      %s87 = sphi 0, %s73
      %s91 = sphi 0, %s91
      %s93 = sphi 0, %s91
      %s94 = sphi 0, %s93
      %s108 = sphi 0, %s94
      %s114 = sphi 0, %s116
      %s117 = sphi 0, %s114
      %s118 = sphi 0, %s117
      %s134 = sphi 0, %s118
      %s140 = sphi 0, %s142
      %s143 = sphi 0, %s140
      %s144 = sphi 0, %s143
      %s160 = sphi 0, %s144
    $region4: #{tpu_custom_call.1} parent=1 // loop_header_branch
      %18 = sbr.rel (%p16) target = $region8
    $region5: #{tpu_custom_call.1} parent=1 // loop_body
      %s20 = ssub.s32 %s15, 1
      %s21 = ssub.s32 %s15, 2
      %s22 = sadd.s32 %s15, 1
      %s23 = ssub.s32 %s15, %s22
      %p24 = scmp.eq.s32.totalorder %s23, 0
      %s26 = sadd.s32 %s25, 1
      %s27 = scalar_select %p24, %s25, %s26
      %p30 = pneg %p24
      %p31 = scmp.eq.s32.totalorder %s15, 1
      %p32 = por %p30, %p31
      %p33 = scmp.ne.s32.totalorder %s25, %s28
      %p34 = scmp.eq.s32.totalorder %s15, 0
      %p35 = por %p33, %p34
      %p36 = scmp.ne.s32.totalorder %s25, %s28
      %p37 = scmp.eq.s32.totalorder %s20, 1
      %p38 = por %p36, %p37
      %p39 = scmp.ne.s32.totalorder %s28, %s29
      %p40 = scmp.eq.s32.totalorder %s20, 0
      %p41 = por %p39, %p40
      %p42 = scmp.ne.s32.totalorder %s28, %s29
      %p43 = scmp.eq.s32.totalorder %s21, 1
      %p44 = por %p42, %p43
      %p46 = scmp.ne.s32.totalorder %s29, %s45
      %p47 = scmp.eq.s32.totalorder %s21, 0
      %p48 = por %p46, %p47
      %s50 = sadd.s32 %s49, 1
      %p53 = scmp.eq.s32.totalorder %s15, 1
      %p54 = scmp.ne.s32.totalorder %s49, %s51
      %p55 = scmp.eq.s32.totalorder %s15, 0
      %p56 = por %p54, %p55
      %p57 = scmp.ne.s32.totalorder %s49, %s51
      %p58 = scmp.eq.s32.totalorder %s20, 1
      %p59 = por %p57, %p58
      %p60 = scmp.ne.s32.totalorder %s51, %s52
      %p61 = scmp.eq.s32.totalorder %s20, 0
      %p62 = por %p60, %p61
      %p63 = scmp.ne.s32.totalorder %s51, %s52
      %p64 = scmp.eq.s32.totalorder %s21, 1
      %p65 = por %p63, %p64
      %p67 = scmp.ne.s32.totalorder %s52, %s66
      %p68 = scmp.eq.s32.totalorder %s21, 0
      %p69 = por %p67, %p68
      %s71 = sadd.s32 %s70, 1
      %p74 = scmp.eq.s32.totalorder %s15, 1
      %p75 = scmp.ne.s32.totalorder %s70, %s72
      %p76 = scmp.eq.s32.totalorder %s15, 0
      %p77 = por %p75, %p76
      %p78 = scmp.ne.s32.totalorder %s70, %s72
      %p79 = scmp.eq.s32.totalorder %s20, 1
      %p80 = por %p78, %p79
      %p81 = scmp.ne.s32.totalorder %s72, %s73
      %p82 = scmp.eq.s32.totalorder %s20, 0
      %p83 = por %p81, %p82
      %p84 = scmp.ne.s32.totalorder %s72, %s73
      %p85 = scmp.eq.s32.totalorder %s21, 1
      %p86 = por %p84, %p85
      %p88 = scmp.ne.s32.totalorder %s73, %s87
      %p89 = scmp.eq.s32.totalorder %s21, 0
      %p90 = por %p88, %p89
      %s92 = sadd.s32 %s91, 1
      %p95 = scmp.eq.s32.totalorder %s15, 1
      %p96 = scmp.ne.s32.totalorder %s91, %s93
      %p97 = scmp.eq.s32.totalorder %s15, 0
      %p98 = por %p96, %p97
      %p99 = scmp.ne.s32.totalorder %s91, %s93
      %p100 = scmp.eq.s32.totalorder %s20, 1
      %p101 = por %p99, %p100
      %p102 = scmp.ne.s32.totalorder %s93, %s94
      %p103 = scmp.eq.s32.totalorder %s20, 0
      %p104 = por %p102, %p103
      %p105 = scmp.ne.s32.totalorder %s93, %s94
      %p106 = scmp.eq.s32.totalorder %s21, 1
      %p107 = por %p105, %p106
      %p109 = scmp.ne.s32.totalorder %s94, %s108
      %p110 = scmp.eq.s32.totalorder %s21, 0
      %p111 = por %p109, %p110
      %s112 = ssub.s32 %s15, %s22
      %p113 = scmp.eq.s32.totalorder %s112, 0
      %s115 = sadd.s32 %s114, 1
      %s116 = scalar_select %p113, %s114, %s115
      %p119 = pneg %p113
      %p120 = scmp.eq.s32.totalorder %s15, 1
      %p121 = por %p119, %p120
      %p122 = scmp.ne.s32.totalorder %s114, %s117
      %p123 = scmp.eq.s32.totalorder %s15, 0
      %p124 = por %p122, %p123
      %p125 = scmp.ne.s32.totalorder %s114, %s117
      %p126 = scmp.eq.s32.totalorder %s20, 1
      %p127 = por %p125, %p126
      %p128 = scmp.ne.s32.totalorder %s117, %s118
      %p129 = scmp.eq.s32.totalorder %s20, 0
      %p130 = por %p128, %p129
      %p131 = scmp.ne.s32.totalorder %s117, %s118
      %p132 = scmp.eq.s32.totalorder %s21, 1
      %p133 = por %p131, %p132
      %p135 = scmp.ne.s32.totalorder %s118, %s134
      %p136 = scmp.eq.s32.totalorder %s21, 0
      %p137 = por %p135, %p136
      %s138 = ssub.s32 %s15, %s22
      %p139 = scmp.eq.s32.totalorder %s138, 0
      %s141 = sadd.s32 %s140, 1
      %s142 = scalar_select %p139, %s140, %s141
      %p145 = pneg %p139
      %p146 = scmp.eq.s32.totalorder %s15, 1
      %p147 = por %p145, %p146
      %p148 = scmp.ne.s32.totalorder %s140, %s143
      %p149 = scmp.eq.s32.totalorder %s15, 0
      %p150 = por %p148, %p149
      %p151 = scmp.ne.s32.totalorder %s140, %s143
      %p152 = scmp.eq.s32.totalorder %s20, 1
      %p153 = por %p151, %p152
      %p154 = scmp.ne.s32.totalorder %s143, %s144
      %p155 = scmp.eq.s32.totalorder %s20, 0
      %p156 = por %p154, %p155
      %p157 = scmp.ne.s32.totalorder %s143, %s144
      %p158 = scmp.eq.s32.totalorder %s21, 1
      %p159 = por %p157, %p158
      %p161 = scmp.ne.s32.totalorder %s144, %s160
      %p162 = scmp.eq.s32.totalorder %s21, 0
      %p163 = por %p161, %p162
      %p164 = scmp.le.s32.totalorder 1, %s15
      %p165 = scmp.lt.s32.totalorder %s15, 3
      %p166 = pnand %p164, %p165
      %p167 = pneg %p166
      // Predicated region
      $region9: #{tpu_custom_call.1} parent=5 // pred_check
        _
      $region10: #{tpu_custom_call.1} parent=5 // pred_check_branch
        %169 = sbr.rel (%p166) target = $region12
      $region11: #{tpu_custom_call.1} parent=5 // pred_region
        %s170 = ssub.s32 %s15, 1
        // Predicated region
        $region13: #{tpu_custom_call.1} parent=11 // pred_check
          %p171 = pneg %p62
        $region14: #{tpu_custom_call.1} parent=11 // pred_check_branch
          %173 = sbr.rel (%p171) target = $region16
        $region15: #{tpu_custom_call.1} parent=11 // pred_region
          _
        $region16: #{tpu_custom_call.1} parent=11 // pred_fallthru
          _
        // Predicated region
        $region17: #{tpu_custom_call.1} parent=11 // pred_check
          %p174 = pneg %p83
        $region18: #{tpu_custom_call.1} parent=11 // pred_check_branch
          %176 = sbr.rel (%p174) target = $region20
        $region19: #{tpu_custom_call.1} parent=11 // pred_region
          _
        $region20: #{tpu_custom_call.1} parent=11 // pred_fallthru
          _
        // Predicated region
        $region21: #{tpu_custom_call.1} parent=11 // pred_check
          %p177 = pneg %p104
        $region22: #{tpu_custom_call.1} parent=11 // pred_check_branch
          %179 = sbr.rel (%p177) target = $region24
        $region23: #{tpu_custom_call.1} parent=11 // pred_region
          _
        $region24: #{tpu_custom_call.1} parent=11 // pred_fallthru
          _
      $region12: #{tpu_custom_call.1} parent=5 // pred_fallthru
        _
      %p180 = scmp.lt.s32.totalorder %s15, 2
      // Predicated region
      $region25: #{tpu_custom_call.1} parent=5 // pred_check
        %p181 = pneg %p180
      $region26: #{tpu_custom_call.1} parent=5 // pred_check_branch
        %183 = sbr.rel (%p181) target = $region28
      $region27: #{tpu_custom_call.1} parent=5 // pred_region
        // Predicated region
        $region29: #{tpu_custom_call.1} parent=27 // pred_check
          %p184 = pneg %p35
        $region30: #{tpu_custom_call.1} parent=27 // pred_check_branch
          %186 = sbr.rel (%p184) target = $region32
        $region31: #{tpu_custom_call.1} parent=27 // pred_region
          %s187 = smul.u32 8, %s15
          %p188 = scmp.lt.s32.totalorder %s187, 15
          %s189 = scalar_select %p188, %s187, 15
          %s190 = smul.addr %s189, 8
          %s191 = scalar_lea.vmem %s0, %s190
          %s192 = smul.u32 8, %s15
        $region32: #{tpu_custom_call.1} parent=27 // pred_fallthru
          _
      $region28: #{tpu_custom_call.1} parent=5 // pred_fallthru
        _
      %p193 = scmp.le.s32.totalorder 1, %s15
      %p194 = scmp.lt.s32.totalorder %s15, 3
      %p195 = pnand %p193, %p194
      %p196 = pneg %p195
      // Predicated region
      $region33: #{tpu_custom_call.1} parent=5 // pred_check
        _
      $region34: #{tpu_custom_call.1} parent=5 // pred_check_branch
        %198 = sbr.rel (%p195) target = $region36
      $region35: #{tpu_custom_call.1} parent=5 // pred_region
        %s199 = ssub.s32 %s15, 1
        %s200 = smul.u32 8, %s20
        %p201 = scmp.lt.s32.totalorder %s200, 15
        %s202 = scalar_select %p201, %s200, 15
        %s203 = smul.addr %s202, 8
        %s204 = scalar_lea.vmem %s0, %s203
        %p205 = pneg %p41
        %p206 = pneg %p38
        %p207 = pneg %p62
        %p208 = pneg %p59
        %p209 = pneg %p83
        %p210 = pneg %p80
        %p211 = pneg %p104
        %p212 = pneg %p101
        %p213 = pneg %p130
        %p214 = pneg %p127
        %s215 = smul.u32 8, %s20
        %p216 = scmp.lt.s32.totalorder %s215, 15
        %s217 = scalar_select %p216, %s215, 15
        %s218 = smul.addr %s217, 8
        %s219 = scalar_lea.vmem %s4, %s218
        %p220 = pneg %p156
        %p221 = pneg %p153
        %s222 = sand.u32 %s143, 1
        %s223 = scalar_lea.sflag [#allocation3], %s222
        %s224 = sand.u32 %s143, 1
        %s225 = smul.addr %s224, 8
        %s226 = scalar_lea.vmem [#allocation2], %s225
        %s227 = smul.u32 8, %s20
        %p228 = scmp.lt.s32.totalorder %s227, 15
        %s229 = scalar_select %p228, %s227, 15
        %s230 = smul.addr %s229, 8
        %s231 = scalar_lea.vmem %s0, %s230
        %s232 = smul.u32 8, %s20
        %s233 = smul.u32 8, %s20
        %p234 = scmp.lt.s32.totalorder %s233, 15
        %s235 = scalar_select %p234, %s233, 15
        %s236 = smul.addr %s235, 8
        %s237 = scalar_lea.vmem %s4, %s236
        %s238 = smul.u32 8, %s20
        %v240 = vld [vmem:[%s231] sm:$0xff]
        %v241 = vld [vmem:[%s231 + $0x8] sm:$0xff]
        %v242 = vld [vmem:[%s231 + $0x10] sm:$0xff]
        %v243 = vld [vmem:[%s231 + $0x18] sm:$0xff]
        %v244 = vld [vmem:[%s231 + $0x20] sm:$0xff]
        %v245 = vld [vmem:[%s231 + $0x28] sm:$0xff]
        %v246 = vld [vmem:[%s231 + $0x30] sm:$0xff]
        %v247 = vld [vmem:[%s231 + $0x38] sm:$0xff]
        %v248 = vld [vmem:[%s1] sm:$0xff]
        %v249 = vld [vmem:[%s1 + $0x8] sm:$0xff]
        %v250 = vld [vmem:[%s1 + $0x10] sm:$0xff]
        %v251 = vld [vmem:[%s1 + $0x18] sm:$0xff]
        %v252 = vld [vmem:[%s1 + $0x20] sm:$0xff]
        %v253 = vld [vmem:[%s1 + $0x28] sm:$0xff]
        %v254 = vld [vmem:[%s1 + $0x30] sm:$0xff]
        %v255 = vld [vmem:[%s1 + $0x38] sm:$0xff]
        %v256 = vld [vmem:[%s2] sm:$0x3]
        %v258 = vlaneseq
        %v259 = vshrl.u32 %v258, 7
        %v260 = vsub.s32 0, %v259
        %v261 = vrot.slane %v256, %v260
        %v262 = vlaneseq
        %v263 = vshrl.u32 %v262, 7
        %v264 = vsub.s32 1, %v263
        %v265 = vrot.slane %v256, %v264
        %vm268 = vcmask 261120
        %v270 = vsel %vm268, %v240, 0
        %v273 = vsel %vm268, %v241, 0
        %v276 = vsel %vm268, %v242, 0
        %v279 = vsel %vm268, %v243, 0
        %v282 = vsel %vm268, %v244, 0
        %v285 = vsel %vm268, %v245, 0
        %v288 = vsel %vm268, %v246, 0
        %v291 = vsel %vm268, %v247, 0
        %293 = vmatprep.subr.mxu0 0.0
        %294 = vmatpush1.msra.mxu0 0.0
        %295 = vmatprep.subr.mxu0 0.0
        %296 = vmatpush1.msra.mxu0 0.0
        %297 = vmatprep.subr.mxu0 0.0
        %298 = vmatpush1.msra.mxu0 0.0
        %299 = vmatprep.subr.mxu0 0.0
        %300 = vmatpush1.msra.mxu0 0.0
        %301 = vmatprep.subr.mxu0 0.0
        %302 = vmatpush1.msra.mxu0 0.0
        %303 = vmatprep.subr.mxu0 0.0
        %304 = vmatpush1.msra.mxu0 0.0
        %305 = vmatprep.subr.mxu0 0.0
        %306 = vmatpush1.msra.mxu0 0.0
        %307 = vmatprep.subr.mxu0 0.0
        %308 = vmatpush1.msra.mxu0 0.0
        %309 = vmatprep.subr.mxu0 0.0
        %310 = vmatpush1.msra.mxu0 0.0
        %311 = vmatprep.subr.mxu0 0.0
        %312 = vmatpush1.msra.mxu0 0.0
        %313 = vmatprep.subr.mxu0 0.0
        %314 = vmatpush1.msra.mxu0 0.0
        %315 = vmatprep.subr.mxu0 0.0
        %316 = vmatpush1.msra.mxu0 0.0
        %317 = vmatprep.subr.mxu0 %v255
        %318 = vmatpush1.msra.mxu0 %v254
        %319 = vmatprep.subr.mxu0 %v253
        %320 = vmatpush1.msra.mxu0 %v252
        %321 = vmatprep.subr.mxu0 %v251
        %322 = vmatpush1.msra.mxu0 %v250
        %323 = vmatprep.subr.mxu0 %v249
        %324 = vmatpush1.msra.mxu0 %v248
        %325 = vmatprep.subr.mxu0 0.0
        %326 = vmatpush2.msra.mxu0 0.0
        %327 = vmatprep.subr.mxu0 0.0
        %328 = vmatpush2.msra.mxu0 0.0
        %329 = vmatprep.subr.mxu0 0.0
        %330 = vmatpush2.msra.mxu0 0.0
        %331 = vmatprep.subr.mxu0 0.0
        %332 = vmatpush2.msra.mxu0 0.0
        %333 = vmatprep.subr.mxu0 0.0
        %334 = vmatpush2.msra.mxu0 0.0
        %335 = vmatprep.subr.mxu0 0.0
        %336 = vmatpush2.msra.mxu0 0.0
        %337 = vmatprep.subr.mxu0 0.0
        %338 = vmatpush2.msra.mxu0 0.0
        %339 = vmatprep.subr.mxu0 0.0
        %340 = vmatpush2.msra.mxu0 0.0
        %341 = vmatprep.subr.mxu0 0.0
        %342 = vmatpush2.msra.mxu0 0.0
        %343 = vmatprep.subr.mxu0 0.0
        %344 = vmatpush2.msra.mxu0 0.0
        %345 = vmatprep.subr.mxu0 0.0
        %346 = vmatpush2.msra.mxu0 0.0
        %347 = vmatprep.subr.mxu0 0.0
        %348 = vmatpush2.msra.mxu0 0.0
        %349 = vmatprep.subr.mxu0 0.0
        %350 = vmatpush2.msra.mxu0 0.0
        %351 = vmatprep.subr.mxu0 0.0
        %352 = vmatpush2.msra.mxu0 0.0
        %353 = vmatprep.subr.mxu0 0.0
        %354 = vmatpush2.msra.mxu0 0.0
        %355 = vmatprep.subr.mxu0 0.0
        %356 = vmatpush2.msra.mxu0 0.0
        %357 = vmatprep.mubr.f32.mxu0 0.0
        %358 = vmatmul.mubr.f32.gmra.mxu0 %v270
        %v359 = vpop.f32.mrf.mxu0
        %v360 = vadd.f32 %v261, %v359
        %v361 = vpop.f32.mrf.mxu0
        %v362 = vadd.f32 %v265, %v361
        %363 = vmatprep.mubr.f32.mxu0 0.0
        %364 = vmatmul.mubr.f32.gmra.mxu0 %v273
        %v365 = vpop.f32.mrf.mxu0
        %v366 = vadd.f32 %v261, %v365
        %v367 = vpop.f32.mrf.mxu0
        %v368 = vadd.f32 %v265, %v367
        %369 = vmatprep.mubr.f32.mxu0 0.0
        %370 = vmatmul.mubr.f32.gmra.mxu0 %v276
        %v371 = vpop.f32.mrf.mxu0
        %v372 = vadd.f32 %v261, %v371
        %v373 = vpop.f32.mrf.mxu0
        %v374 = vadd.f32 %v265, %v373
        %375 = vmatprep.mubr.f32.mxu0 0.0
        %376 = vmatmul.mubr.f32.gmra.mxu0 %v279
        %v377 = vpop.f32.mrf.mxu0
        %v378 = vadd.f32 %v261, %v377
        %v379 = vpop.f32.mrf.mxu0
        %v380 = vadd.f32 %v265, %v379
        %381 = vmatprep.mubr.f32.mxu0 0.0
        %382 = vmatmul.mubr.f32.gmra.mxu0 %v282
        %v383 = vpop.f32.mrf.mxu0
        %v384 = vadd.f32 %v261, %v383
        %v385 = vpop.f32.mrf.mxu0
        %v386 = vadd.f32 %v265, %v385
        %387 = vmatprep.mubr.f32.mxu0 0.0
        %388 = vmatmul.mubr.f32.gmra.mxu0 %v285
        %v389 = vpop.f32.mrf.mxu0
        %v390 = vadd.f32 %v261, %v389
        %v391 = vpop.f32.mrf.mxu0
        %v392 = vadd.f32 %v265, %v391
        %393 = vmatprep.mubr.f32.mxu0 0.0
        %394 = vmatmul.mubr.f32.gmra.mxu0 %v288
        %v395 = vpop.f32.mrf.mxu0
        %v396 = vadd.f32 %v261, %v395
        %v397 = vpop.f32.mrf.mxu0
        %v398 = vadd.f32 %v265, %v397
        %399 = vmatprep.mubr.f32.mxu0 0.0
        %400 = vmatmul.mubr.f32.gmra.mxu0 %v291
        %v401 = vpop.f32.mrf.mxu0
        %v402 = vadd.f32 %v261, %v401
        %v403 = vpop.f32.mrf.mxu0
        %v404 = vadd.f32 %v265, %v403
        %405 = vdwg.mxu0
        %v406 = vlaneseq
        %v407 = vand.u32 %v406, 127
        %408 = vmin.xlane.f32.xlu0 %v360
        %v409 = vpop.xlane.xlu0 %408
        %410 = vmin.xlane.f32.xlu0 %v366
        %v411 = vpop.xlane.xlu0 %410
        %412 = vmin.xlane.f32.xlu0 %v372
        %v413 = vpop.xlane.xlu0 %412
        %414 = vmin.xlane.f32.xlu0 %v378
        %v415 = vpop.xlane.xlu0 %414
        %416 = vmin.xlane.f32.xlu0 %v384
        %v417 = vpop.xlane.xlu0 %416
        %418 = vmin.xlane.f32.xlu0 %v390
        %v419 = vpop.xlane.xlu0 %418
        %420 = vmin.xlane.f32.xlu0 %v396
        %v421 = vpop.xlane.xlu0 %420
        %422 = vmin.xlane.f32.xlu0 %v402
        %v423 = vpop.xlane.xlu0 %422
        %vm424 = vcmp.eq.f32.partialorder %v360, %v409
        %vm425 = vcmp.eq.f32.partialorder %v366, %v411
        %vm426 = vcmp.eq.f32.partialorder %v372, %v413
        %vm427 = vcmp.eq.f32.partialorder %v378, %v415
        %vm428 = vcmp.eq.f32.partialorder %v384, %v417
        %vm429 = vcmp.eq.f32.partialorder %v390, %v419
        %vm430 = vcmp.eq.f32.partialorder %v396, %v421
        %vm431 = vcmp.eq.f32.partialorder %v402, %v423
        %v432 = vsel %vm424, %v407, 128
        %v433 = vsel %vm425, %v407, 128
        %v434 = vsel %vm426, %v407, 128
        %v435 = vsel %vm427, %v407, 128
        %v436 = vsel %vm428, %v407, 128
        %v437 = vsel %vm429, %v407, 128
        %v438 = vsel %vm430, %v407, 128
        %v439 = vsel %vm431, %v407, 128
        %v440 = vand.u32 %v432, 65535
        %v441 = vshra.s32 %v432, 16
        %v442 = vcvt.s32.f32 %v440
        %v443 = vcvt.s32.f32 %v441
        %444 = vmin.xlane.f32.xlu0 %v443
        %v445 = vpop.xlane.xlu0 %444
        %vm446 = vcmp.eq.f32.partialorder %v443, %v445
        %v447 = vsel %vm446, %v442, inf
        %448 = vmin.xlane.f32.xlu0 %v447
        %v449 = vpop.xlane.xlu0 %448
        %v450 = vcvt.f32.s32 %v449
        %v451 = vcvt.f32.s32 %v445
        %v452 = vshll.u32 %v451, 16
        %v453 = vadd.s32 %v452, %v450
        %v454 = vand.u32 %v433, 65535
        %v455 = vshra.s32 %v433, 16
        %v456 = vcvt.s32.f32 %v454
        %v457 = vcvt.s32.f32 %v455
        %458 = vmin.xlane.f32.xlu0 %v457
        %v459 = vpop.xlane.xlu0 %458
        %vm460 = vcmp.eq.f32.partialorder %v457, %v459
        %v461 = vsel %vm460, %v456, inf
        %462 = vmin.xlane.f32.xlu0 %v461
        %v463 = vpop.xlane.xlu0 %462
        %v464 = vcvt.f32.s32 %v463
        %v465 = vcvt.f32.s32 %v459
        %v466 = vshll.u32 %v465, 16
        %v467 = vadd.s32 %v466, %v464
        %v468 = vand.u32 %v434, 65535
        %v469 = vshra.s32 %v434, 16
        %v470 = vcvt.s32.f32 %v468
        %v471 = vcvt.s32.f32 %v469
        %472 = vmin.xlane.f32.xlu0 %v471
        %v473 = vpop.xlane.xlu0 %472
        %vm474 = vcmp.eq.f32.partialorder %v471, %v473
        %v475 = vsel %vm474, %v470, inf
        %476 = vmin.xlane.f32.xlu0 %v475
        %v477 = vpop.xlane.xlu0 %476
        %v478 = vcvt.f32.s32 %v477
        %v479 = vcvt.f32.s32 %v473
        %v480 = vshll.u32 %v479, 16
        %v481 = vadd.s32 %v480, %v478
        %v482 = vand.u32 %v435, 65535
        %v483 = vshra.s32 %v435, 16
        %v484 = vcvt.s32.f32 %v482
        %v485 = vcvt.s32.f32 %v483
        %486 = vmin.xlane.f32.xlu0 %v485
        %v487 = vpop.xlane.xlu0 %486
        %vm488 = vcmp.eq.f32.partialorder %v485, %v487
        %v489 = vsel %vm488, %v484, inf
        %490 = vmin.xlane.f32.xlu0 %v489
        %v491 = vpop.xlane.xlu0 %490
        %v492 = vcvt.f32.s32 %v491
        %v493 = vcvt.f32.s32 %v487
        %v494 = vshll.u32 %v493, 16
        %v495 = vadd.s32 %v494, %v492
        %v496 = vand.u32 %v436, 65535
        %v497 = vshra.s32 %v436, 16
        %v498 = vcvt.s32.f32 %v496
        %v499 = vcvt.s32.f32 %v497
        %500 = vmin.xlane.f32.xlu0 %v499
        %v501 = vpop.xlane.xlu0 %500
        %vm502 = vcmp.eq.f32.partialorder %v499, %v501
        %v503 = vsel %vm502, %v498, inf
        %504 = vmin.xlane.f32.xlu0 %v503
        %v505 = vpop.xlane.xlu0 %504
        %v506 = vcvt.f32.s32 %v505
        %v507 = vcvt.f32.s32 %v501
        %v508 = vshll.u32 %v507, 16
        %v509 = vadd.s32 %v508, %v506
        %v510 = vand.u32 %v437, 65535
        %v511 = vshra.s32 %v437, 16
        %v512 = vcvt.s32.f32 %v510
        %v513 = vcvt.s32.f32 %v511
        %514 = vmin.xlane.f32.xlu0 %v513
        %v515 = vpop.xlane.xlu0 %514
        %vm516 = vcmp.eq.f32.partialorder %v513, %v515
        %v517 = vsel %vm516, %v512, inf
        %518 = vmin.xlane.f32.xlu0 %v517
        %v519 = vpop.xlane.xlu0 %518
        %v520 = vcvt.f32.s32 %v519
        %v521 = vcvt.f32.s32 %v515
        %v522 = vshll.u32 %v521, 16
        %v523 = vadd.s32 %v522, %v520
        %v524 = vand.u32 %v438, 65535
        %v525 = vshra.s32 %v438, 16
        %v526 = vcvt.s32.f32 %v524
        %v527 = vcvt.s32.f32 %v525
        %528 = vmin.xlane.f32.xlu0 %v527
        %v529 = vpop.xlane.xlu0 %528
        %vm530 = vcmp.eq.f32.partialorder %v527, %v529
        %v531 = vsel %vm530, %v526, inf
        %532 = vmin.xlane.f32.xlu0 %v531
        %v533 = vpop.xlane.xlu0 %532
        %v534 = vcvt.f32.s32 %v533
        %v535 = vcvt.f32.s32 %v529
        %v536 = vshll.u32 %v535, 16
        %v537 = vadd.s32 %v536, %v534
        %v538 = vand.u32 %v439, 65535
        %v539 = vshra.s32 %v439, 16
        %v540 = vcvt.s32.f32 %v538
        %v541 = vcvt.s32.f32 %v539
        %542 = vmin.xlane.f32.xlu0 %v541
        %v543 = vpop.xlane.xlu0 %542
        %vm544 = vcmp.eq.f32.partialorder %v541, %v543
        %v545 = vsel %vm544, %v540, inf
        %546 = vmin.xlane.f32.xlu0 %v545
        %v547 = vpop.xlane.xlu0 %546
        %v548 = vcvt.f32.s32 %v547
        %v549 = vcvt.f32.s32 %v543
        %v550 = vshll.u32 %v549, 16
        %v551 = vadd.s32 %v550, %v548
        %vm552 = vcmp.eq.s32.totalorder %v407, %v453
        %vm553 = vcmp.eq.s32.totalorder %v407, %v467
        %vm554 = vcmp.eq.s32.totalorder %v407, %v481
        %vm555 = vcmp.eq.s32.totalorder %v407, %v495
        %vm556 = vcmp.eq.s32.totalorder %v407, %v509
        %vm557 = vcmp.eq.s32.totalorder %v407, %v523
        %vm558 = vcmp.eq.s32.totalorder %v407, %v537
        %vm559 = vcmp.eq.s32.totalorder %v407, %v551
        %v560 = vsel %vm552, 1, 0
        %v561 = vsel %vm553, 1, 0
        %v562 = vsel %vm554, 1, 0
        %v563 = vsel %vm555, 1, 0
        %v564 = vsel %vm556, 1, 0
        %v565 = vsel %vm557, 1, 0
        %v566 = vsel %vm558, 1, 0
        %v567 = vsel %vm559, 1, 0
        %v568 = vcvt.s32.f32 %v560
        %v569 = vcvt.s32.f32 %v561
        %v570 = vcvt.s32.f32 %v562
        %v571 = vcvt.s32.f32 %v563
        %v572 = vcvt.s32.f32 %v564
        %v573 = vcvt.s32.f32 %v565
        %v574 = vcvt.s32.f32 %v566
        %v575 = vcvt.s32.f32 %v567
        %v576 = vpack.c.bf16 %v569, %v568
        %v577 = vpack.c.bf16 %v571, %v570
        %v578 = vpack.c.bf16 %v573, %v572
        %v579 = vpack.c.bf16 %v575, %v574
        %v580 = vld [vmem:[%s3] sm:$0xf]
        %v581 = vld [vmem:[%s3 + $0x4] sm:$0xf]
        %v582 = vld [vmem:[%s3 + $0x8] sm:$0xf]
        %v583 = vld [vmem:[%s3 + $0xc] sm:$0xf]
        %v584 = vld [vmem:[%s3 + $0x10] sm:$0xf]
        %v585 = vld [vmem:[%s3 + $0x14] sm:$0xf]
        %v586 = vld [vmem:[%s3 + $0x18] sm:$0xf]
        %v587 = vld [vmem:[%s3 + $0x1c] sm:$0xf]
        %v588 = vld [vmem:[%s3 + $0x20] sm:$0xf]
        %v589 = vld [vmem:[%s3 + $0x24] sm:$0xf]
        %v590 = vld [vmem:[%s3 + $0x28] sm:$0xf]
        %v591 = vld [vmem:[%s3 + $0x2c] sm:$0xf]
        %v592 = vld [vmem:[%s3 + $0x30] sm:$0xf]
        %v593 = vld [vmem:[%s3 + $0x34] sm:$0xf]
        %v594 = vld [vmem:[%s3 + $0x38] sm:$0xf]
        %v595 = vld [vmem:[%s3 + $0x3c] sm:$0xf]
        %v612 = vunpack.c.l.b16 %v580
        %v613 = vunpack.c.l.b16 %v581
        %v614 = vunpack.c.l.b16 %v582
        %v615 = vunpack.c.l.b16 %v583
        %v616 = vunpack.c.l.b16 %v584
        %v617 = vunpack.c.l.b16 %v585
        %v618 = vunpack.c.l.b16 %v586
        %v619 = vunpack.c.l.b16 %v587
        %v620 = vunpack.c.l.b16 %v588
        %v621 = vunpack.c.l.b16 %v589
        %v622 = vunpack.c.l.b16 %v590
        %v623 = vunpack.c.l.b16 %v591
        %v624 = vunpack.c.l.b16 %v592
        %v625 = vunpack.c.l.b16 %v593
        %v626 = vunpack.c.l.b16 %v594
        %v627 = vunpack.c.l.b16 %v595
        %v628 = vpack.c.b16 %v613, %v612
        %v629 = vpack.c.b16 %v615, %v614
        %v630 = vpack.c.b16 %v617, %v616
        %v631 = vpack.c.b16 %v619, %v618
        %v632 = vpack.c.b16 %v621, %v620
        %v633 = vpack.c.b16 %v623, %v622
        %v634 = vpack.c.b16 %v625, %v624
        %v635 = vpack.c.b16 %v627, %v626
        %644 = vmatprep.subr.bf16.mxu0 0
        %645 = vmatpush1.bf16.msra.mxu0 %v635
        %646 = vmatprep.subr.bf16.mxu0 0
        %647 = vmatpush1.bf16.msra.mxu0 %v634
        %648 = vmatprep.subr.bf16.mxu0 0
        %649 = vmatpush1.bf16.msra.mxu0 %v633
        %650 = vmatprep.subr.bf16.mxu0 0
        %651 = vmatpush1.bf16.msra.mxu0 %v632
        %652 = vmatprep.subr.bf16.mxu0 0
        %653 = vmatpush1.bf16.msra.mxu0 %v631
        %654 = vmatprep.subr.bf16.mxu0 0
        %655 = vmatpush1.bf16.msra.mxu0 %v630
        %656 = vmatprep.subr.bf16.mxu0 0
        %657 = vmatpush1.bf16.msra.mxu0 %v629
        %658 = vmatprep.subr.bf16.mxu0 0
        %659 = vmatpush1.bf16.msra.mxu0 %v628
        %660 = vmatprep.subr.bf16.mxu0 0
        %661 = vmatpush2.bf16.msra.mxu0 0
        %662 = vmatprep.subr.bf16.mxu0 0
        %663 = vmatpush2.bf16.msra.mxu0 0
        %664 = vmatprep.subr.bf16.mxu0 0
        %665 = vmatpush2.bf16.msra.mxu0 0
        %666 = vmatprep.subr.bf16.mxu0 0
        %667 = vmatpush2.bf16.msra.mxu0 0
        %668 = vmatprep.subr.bf16.mxu0 0
        %669 = vmatpush2.bf16.msra.mxu0 0
        %670 = vmatprep.subr.bf16.mxu0 0
        %671 = vmatpush2.bf16.msra.mxu0 0
        %672 = vmatprep.subr.bf16.mxu0 0
        %673 = vmatpush2.bf16.msra.mxu0 0
        %674 = vmatprep.subr.bf16.mxu0 0
        %675 = vmatpush2.bf16.msra.mxu0 0
        %676 = vmatprep.mubr.bf16.mxu0 0
        %677 = vmatmul.mubr.bf16.gmra.mxu0 %v576
        %v678 = vpop.f32.mrf.mxu0
        %v679 = vadd.f32 0.0, %v678
        %v680 = vpop.f32.mrf.mxu0
        %v681 = vpop.f32.mrf.mxu0
        %v682 = vadd.f32 0.0, %v681
        %v683 = vpop.f32.mrf.mxu0
        %684 = vmatprep.mubr.bf16.mxu0 0
        %685 = vmatmul.mubr.bf16.gmra.mxu0 %v577
        %v686 = vpop.f32.mrf.mxu0
        %v687 = vadd.f32 0.0, %v686
        %v688 = vpop.f32.mrf.mxu0
        %v689 = vpop.f32.mrf.mxu0
        %v690 = vadd.f32 0.0, %v689
        %v691 = vpop.f32.mrf.mxu0
        %692 = vmatprep.mubr.bf16.mxu0 0
        %693 = vmatmul.mubr.bf16.gmra.mxu0 %v578
        %v694 = vpop.f32.mrf.mxu0
        %v695 = vadd.f32 0.0, %v694
        %v696 = vpop.f32.mrf.mxu0
        %v697 = vpop.f32.mrf.mxu0
        %v698 = vadd.f32 0.0, %v697
        %v699 = vpop.f32.mrf.mxu0
        %700 = vmatprep.mubr.bf16.mxu0 0
        %701 = vmatmul.mubr.bf16.gmra.mxu0 %v579
        %v702 = vpop.f32.mrf.mxu0
        %v703 = vadd.f32 0.0, %v702
        %v704 = vpop.f32.mrf.mxu0
        %v705 = vpop.f32.mrf.mxu0
        %v706 = vadd.f32 0.0, %v705
        %v707 = vpop.f32.mrf.mxu0
        %708 = vdwg.mxu0
        %709 = vst.msk [vmem:[%s237] sm:$0xff] %vm268, %v679
        %710 = vst.msk [vmem:[%s237 + $0x8] sm:$0xff] %vm268, %v682
        %711 = vst.msk [vmem:[%s237 + $0x10] sm:$0xff] %vm268, %v687
        %712 = vst.msk [vmem:[%s237 + $0x18] sm:$0xff] %vm268, %v690
        %713 = vst.msk [vmem:[%s237 + $0x20] sm:$0xff] %vm268, %v695
        %714 = vst.msk [vmem:[%s237 + $0x28] sm:$0xff] %vm268, %v698
        %715 = vst.msk [vmem:[%s237 + $0x30] sm:$0xff] %vm268, %v703
        %716 = vst.msk [vmem:[%s237 + $0x38] sm:$0xff] %vm268, %v706
        %v717 = vmul.f32 %v362, %v362
        %v718 = vmul.f32 %v368, %v368
        %v719 = vmul.f32 %v374, %v374
        %v720 = vmul.f32 %v380, %v380
        %v721 = vmul.f32 %v386, %v386
        %v722 = vmul.f32 %v392, %v392
        %v723 = vmul.f32 %v398, %v398
        %v724 = vmul.f32 %v404, %v404
        %vm725 = vcmask 130048
        %v726 = vsel %vm725, %v717, 0.0
        %727 = vadd.xlane.f32.xlu0 %v726
        %v728 = vpop.xlane.xlu0 %727
        %v729 = vsel %vm725, %v718, 0.0
        %730 = vadd.xlane.f32.xlu0 %v729
        %v731 = vpop.xlane.xlu0 %730
        %v732 = vsel %vm725, %v719, 0.0
        %733 = vadd.xlane.f32.xlu0 %v732
        %v734 = vpop.xlane.xlu0 %733
        %v735 = vsel %vm725, %v720, 0.0
        %736 = vadd.xlane.f32.xlu0 %v735
        %v737 = vpop.xlane.xlu0 %736
        %v738 = vsel %vm725, %v721, 0.0
        %739 = vadd.xlane.f32.xlu0 %v738
        %v740 = vpop.xlane.xlu0 %739
        %v741 = vsel %vm725, %v722, 0.0
        %742 = vadd.xlane.f32.xlu0 %v741
        %v743 = vpop.xlane.xlu0 %742
        %v744 = vsel %vm725, %v723, 0.0
        %745 = vadd.xlane.f32.xlu0 %v744
        %v746 = vpop.xlane.xlu0 %745
        %v747 = vsel %vm725, %v724, 0.0
        %748 = vadd.xlane.f32.xlu0 %v747
        %v749 = vpop.xlane.xlu0 %748
        %v750 = vadd.f32 %v728, %v409
        %v751 = vadd.f32 %v731, %v411
        %v752 = vadd.f32 %v734, %v413
        %v753 = vadd.f32 %v737, %v415
        %v754 = vadd.f32 %v740, %v417
        %v755 = vadd.f32 %v743, %v419
        %v756 = vadd.f32 %v746, %v421
        %v757 = vadd.f32 %v749, %v423
        %v758 = vmax.f32 %v750, 0.0
        %v759 = vmax.f32 %v751, 0.0
        %v760 = vmax.f32 %v752, 0.0
        %v761 = vmax.f32 %v753, 0.0
        %v762 = vmax.f32 %v754, 0.0
        %v763 = vmax.f32 %v755, 0.0
        %v764 = vmax.f32 %v756, 0.0
        %v765 = vmax.f32 %v757, 0.0
        %v766 = vlaneseq
        %v767 = vshrl.u32 %v766, 7
        %v768 = vadd.s32 %v767, 8
        %v769 = vadd.s32 %v767, 16
        %v770 = vadd.s32 %v767, 24
        %v771 = vadd.s32 %v767, 32
        %v772 = vadd.s32 %v767, 40
        %v773 = vadd.s32 %v767, 48
        %v774 = vadd.s32 %v767, 56
        %s775 = smul.u32 %s20, 64
        %v776 = vstv %s775
        %v777 = vadd.s32 %v776, %v767
        %v778 = vadd.s32 %v776, %v768
        %v779 = vadd.s32 %v776, %v769
        %v780 = vadd.s32 %v776, %v770
        %v781 = vadd.s32 %v776, %v771
        %v782 = vadd.s32 %v776, %v772
        %v783 = vadd.s32 %v776, %v773
        %v784 = vadd.s32 %v776, %v774
        %vm785 = vcmp.lt.s32.totalorder %v777, 128
        %vm786 = vcmp.lt.s32.totalorder %v778, 128
        %vm787 = vcmp.lt.s32.totalorder %v779, 128
        %vm788 = vcmp.lt.s32.totalorder %v780, 128
        %vm789 = vcmp.lt.s32.totalorder %v781, 128
        %vm790 = vcmp.lt.s32.totalorder %v782, 128
        %vm791 = vcmp.lt.s32.totalorder %v783, 128
        %vm792 = vcmp.lt.s32.totalorder %v784, 128
        %v793 = vsel %vm785, %v758, 0.0
        %v794 = vsel %vm786, %v759, 0.0
        %v795 = vsel %vm787, %v760, 0.0
        %v796 = vsel %vm788, %v761, 0.0
        %v797 = vsel %vm789, %v762, 0.0
        %v798 = vsel %vm790, %v763, 0.0
        %v799 = vsel %vm791, %v764, 0.0
        %v800 = vsel %vm792, %v765, 0.0
        %v801 = vadd.f32 %v793, %v794
        %v802 = vadd.f32 %v801, %v795
        %v803 = vadd.f32 %v802, %v796
        %v804 = vadd.f32 %v803, %v797
        %v805 = vadd.f32 %v804, %v798
        %v806 = vadd.f32 %v805, %v799
        %v807 = vadd.f32 %v806, %v800
        %v808 = vrot.slane %v807, 4
        %v809 = vadd.f32 %v807, %v808
        %v810 = vrot.slane %v809, 2
        %v811 = vadd.f32 %v809, %v810
        %v812 = vrot.slane %v811, 1
        %v813 = vadd.f32 %v811, %v812
        %814 = vst [vmem:[%s226] sm:$0xff] %v813
        %s815 = smul.u32 8, %s20
        %p816 = scmp.lt.s32.totalorder %s815, 15
        %s817 = scalar_select %p816, %s815, 15
        %s818 = smul.addr %s817, 8
        %s819 = scalar_lea.vmem %s4, %s818
        %s820 = sand.u32 %s143, 1
        %s821 = scalar_lea.sflag [#allocation3], %s820
        %s822 = sand.u32 %s143, 1
        %s823 = smul.addr %s822, 8
        %s824 = scalar_lea.vmem [#allocation2], %s823
        // Predicated region
        $region37: #{tpu_custom_call.1} parent=35 // pred_check
          %p825 = pneg %p127
        $region38: #{tpu_custom_call.1} parent=35 // pred_check_branch
          %827 = sbr.rel (%p825) target = $region40
        $region39: #{tpu_custom_call.1} parent=35 // pred_region
          %s828 = smul.u32 8, %s20
        $region40: #{tpu_custom_call.1} parent=35 // pred_fallthru
          _
        // Predicated region
        $region41: #{tpu_custom_call.1} parent=35 // pred_check
          %p829 = pneg %p153
        $region42: #{tpu_custom_call.1} parent=35 // pred_check_branch
          %831 = sbr.rel (%p829) target = $region44
        $region43: #{tpu_custom_call.1} parent=35 // pred_region
          %s833 = ssub.s32 128, 128
          %834 = vsyncadd %s821, %s833
          %s835 = smul.addr %s20, 128
          %s836 = scalar_lea.hbm %s5, %s835
          %s838 = sshll.u32 %s824, 4
          %s839 = int_to_ptr.vmem [resolvable:$true] %s838
          %841 = dma.vmem_to_hbm [thread:$0]  %s839, 128, %s836, %s821
        $region44: #{tpu_custom_call.1} parent=35 // pred_fallthru
          _
      $region36: #{tpu_custom_call.1} parent=5 // pred_fallthru
        _
      %p842 = scmp.le.s32.totalorder 2, %s15
      // Predicated region
      $region45: #{tpu_custom_call.1} parent=5 // pred_check
        %p843 = pneg %p842
      $region46: #{tpu_custom_call.1} parent=5 // pred_check_branch
        %845 = sbr.rel (%p843) target = $region48
      $region47: #{tpu_custom_call.1} parent=5 // pred_region
        %s846 = ssub.s32 %s15, 2
        // Predicated region
        $region49: #{tpu_custom_call.1} parent=47 // pred_check
          %p847 = pneg %p133
        $region50: #{tpu_custom_call.1} parent=47 // pred_check_branch
          %849 = sbr.rel (%p847) target = $region52
        $region51: #{tpu_custom_call.1} parent=47 // pred_region
          %s850 = smul.u32 8, %s21
          %p851 = scmp.lt.s32.totalorder %s850, 15
          %s852 = scalar_select %p851, %s850, 15
          %s853 = smul.addr %s852, 8
          %s854 = scalar_lea.vmem %s4, %s853
        $region52: #{tpu_custom_call.1} parent=47 // pred_fallthru
          _
        // Predicated region
        $region53: #{tpu_custom_call.1} parent=47 // pred_check
          %p855 = pneg %p159
        $region54: #{tpu_custom_call.1} parent=47 // pred_check_branch
          %857 = sbr.rel (%p855) target = $region56
        $region55: #{tpu_custom_call.1} parent=47 // pred_region
          %s858 = sand.u32 %s144, 1
          %s859 = scalar_lea.sflag [#allocation3], %s858
          %s860 = sand.u32 %s144, 1
          %s861 = smul.addr %s860, 8
          %s862 = scalar_lea.vmem [#allocation2], %s861
          %863 = dma.done %s859, 128
        $region56: #{tpu_custom_call.1} parent=47 // pred_fallthru
          _
      $region48: #{tpu_custom_call.1} parent=5 // pred_fallthru
        _
    $region6: #{tpu_custom_call.1} parent=1 // loop_footer
      %s19 = sadd.s32 1, %s15
    $region7: #{tpu_custom_call.1} parent=1 // loop_footer_branch
      %14 = sbr.rel target = $region3
    $region8: #{tpu_custom_call.1} parent=1 // loop_exit
      _
    %864 = vsyncpa [#allocation3], 1
    %s865 = scalar_lea.sflag [#allocation3], 1
    %866 = vsyncpa %s865, 1

</llo_original>
